<compile_context>
chip_gen: v7x
topology: tpu7x:2x2x1
jax: 0.10.0
libtpu: 0.0.40
codegen_flags: <defaults>
</compile_context>

<pallas_src>
import functools

import jax
import jax.numpy as jnp
from jax.experimental import pallas as pl
from jax.experimental.pallas import tpu as pltpu


# Per-grid-step chunk size for the HBM->HBM DMA copy.  Not bounded by VMEM
# (the copy bypasses VMEM); just amortizes the ~0.35 us per-step overhead and
# leaves >=2 chunks on large inputs for v7x's two TensorCores.
_TARGET_CHUNK_BYTES = 8 * 1024 * 1024

_LANE_CANDIDATES = (8192, 4096, 2048, 1024, 512, 256, 128)


def _dma_copy_kernel(chunk_rows, x_hbm, o_hbm, sem):
    """Copy one row-chunk of the flat buffer HBM->HBM with a single DMA."""
    i = pl.program_id(0)
    start = i * chunk_rows
    if chunk_rows % 8 == 0:  # static Python check; chunk_rows is closed over
        start = pl.multiple_of(start, 8)
    cp = pltpu.make_async_copy(
        x_hbm.at[pl.ds(start, chunk_rows), :],
        o_hbm.at[pl.ds(start, chunk_rows), :],
        sem,
    )
    cp.start()
    cp.wait()


def _pick_lanes(total):
    # Prefer the widest lane-dense factorization whose row count is a multiple
    # of 8 (tile-aligned row slices); otherwise the widest that divides.
    for cand in _LANE_CANDIDATES:
        if total % cand == 0 and (total // cand) % 8 == 0:
            return cand
    for cand in _LANE_CANDIDATES:
        if total % cand == 0:
            return cand
    return None


def _pick_num_chunks(rows, row_bytes):
    # Smallest chunk count near the ~8 MiB target that divides rows evenly
    # into multiples of 8; otherwise one single full-buffer DMA.
    desired = max(1, -(-(rows * row_bytes) // _TARGET_CHUNK_BYTES))
    for c in range(desired, min(8 * desired, rows) + 1):
        if rows % c == 0 and (rows // c) % 8 == 0:
            return c
    return 1


def unflatten_pallas(x: jax.Array) -> jax.Array:
    """Unflatten.forward realized as an explicit Pallas HBM->HBM DMA copy."""
    total = x.size
    last = x.shape[-1]
    assert total % last == 0
    out_shape = (1, total // last, last)

    lanes = _pick_lanes(total)
    if lanes is None:
        # total not a multiple of 128: don't pad+copy+slice (3-4x traffic);
        # a contiguous reshape is metadata-only anyway.
        return jnp.reshape(x, out_shape)

    rows = total // lanes
    x_flat = x.reshape(rows, lanes)  # contiguous reshape: metadata-only
    num_chunks = _pick_num_chunks(rows, lanes * x.dtype.itemsize)
    chunk_rows = rows // num_chunks

    out_flat = pl.pallas_call(
        functools.partial(_dma_copy_kernel, chunk_rows),
        out_shape=jax.ShapeDtypeStruct((rows, lanes), x.dtype),
        grid=(num_chunks,),
        in_specs=[pl.BlockSpec(memory_space=pl.ANY)],
        out_specs=pl.BlockSpec(memory_space=pl.ANY),
        scratch_shapes=[pltpu.SemaphoreType.DMA],
        compiler_params=pltpu.CompilerParams(
            # Lets v7x's two TensorCores each issue DMA for disjoint chunks;
            # a no-op on single-TC v5e/v6e.
            dimension_semantics=("parallel",),
        ),
        cost_estimate=pl.CostEstimate(
            flops=0,
            transcendentals=0,
            bytes_accessed=2 * total * x.dtype.itemsize,
        ),
    )(x_flat)

    return out_flat.reshape(out_shape)


def unflatten(x: jax.Array, force_copy: bool = False) -> jax.Array:
    """Unflatten.forward.

    Default path: metadata-only jnp.reshape (zero bytes moved — the fastest
    possible implementation on every TPU generation).  Set force_copy=True to
    run the Pallas HBM->HBM DMA-copy kernel instead (benchmarking path).
    """
    if not force_copy:
        total = x.size
        last = x.shape[-1]
        return jnp.reshape(x, (1, total // last, last))
    return unflatten_pallas(x)


if __name__ == "__main__":
    key = jax.random.PRNGKey(0)
    # Small NCHW-style input consistent with a typical conv-pipeline tensor.
    x = jax.random.normal(key, (2, 4, 16, 16), dtype=jnp.float32)

    expected = x.reshape(1, -1, x.shape[-1])

    # Pallas DMA-copy path (exercises pallas_call).
    y = jax.block_until_ready(unflatten_pallas(x))
    assert y.shape == (1, 2 * 4 * 16, 16), y.shape
    assert y.dtype == x.dtype
    assert bool(jnp.array_equal(y, expected))

    # Default (metadata-only reshape) path.
    z = jax.block_until_ready(unflatten(x))
    assert z.shape == expected.shape
    assert bool(jnp.array_equal(z, expected))

    print("KERNEL_OK")
</pallas_src>

<mosaic_0001>
module attributes {stable_mosaic.version = 11 : i64} {
  func.func @_dma_copy_kernel(%arg0: i32, %arg1: memref<8x256xf32, #tpu.memory_space<any>>, %arg2: memref<8x256xf32, #tpu.memory_space<any>>, %arg3: memref<!tpu.dma_semaphore, #tpu.memory_space<semaphore_mem>>) attributes {dimension_semantics = [#tpu.dimension_semantics<parallel>], iteration_bounds = array<i64: 1>, scalar_prefetch = 0 : i64, scratch_operands = 1 : i64, tpu.core_type = #tpu.core_type<tc>, window_params = [{}, {}]} {
    %c8_i32 = arith.constant 8 : i32
    %0 = arith.muli %arg0, %c8_i32 : i32
    %1 = tpu.assume_multiple %0, 8 : i32
    %c0_i32 = arith.constant 0 : i32
    %2 = tpu.memref_slice %arg1[%1, %c0_i32] : memref<8x256xf32, #tpu.memory_space<any>> -> memref<8x256xf32, #tpu.memory_space<any>>
    %c0_i32_0 = arith.constant 0 : i32
    %3 = tpu.memref_slice %arg2[%1, %c0_i32_0] : memref<8x256xf32, #tpu.memory_space<any>> -> memref<8x256xf32, #tpu.memory_space<any>>
    tpu.enqueue_dma source(%2 : memref<8x256xf32, #tpu.memory_space<any>>) target(%3 : memref<8x256xf32, #tpu.memory_space<any>>) target_semaphore(%arg3 : memref<!tpu.dma_semaphore, #tpu.memory_space<semaphore_mem>>)
    %c0_i32_1 = arith.constant 0 : i32
    %4 = tpu.memref_slice %arg1[%1, %c0_i32_1] : memref<8x256xf32, #tpu.memory_space<any>> -> memref<8x256xf32, #tpu.memory_space<any>>
    %c0_i32_2 = arith.constant 0 : i32
    %5 = tpu.memref_slice %arg2[%1, %c0_i32_2] : memref<8x256xf32, #tpu.memory_space<any>> -> memref<8x256xf32, #tpu.memory_space<any>>
    tpu.wait_dma2 semaphore(%arg3 : memref<!tpu.dma_semaphore, #tpu.memory_space<semaphore_mem>>) src(%4 : memref<8x256xf32, #tpu.memory_space<any>>) dst(%5 : memref<8x256xf32, #tpu.memory_space<any>>)
    return
  }
}

</mosaic_0001>

<llo_original>
// kernel: tpu_custom_call.1
$region0: #{tpu_custom_call.1}
  #allocation0 [shape = 'u32[]', space=smem, size = 0x4, offset = 0x4, fixed_abs, tag = 'smem constant byte address 0x4 - core index']
  #allocation1 [shape = 'u32[144,128]{1,0:T(1,128)}', space=vmem, size = 0x12000, scoped, tag = 'internal scratch']
  #allocation2 [shape = 's32[1]{0}', space=sflag, size = 0x4, scoped, tag = 'scratch operand']
  #allocation3 [shape = 's32[]', space=sflag, size = 0x4, offset = 0, fixed_abs, tag = 'sflag constant byte address 0x0 - dummy sync flag']
  #allocation4 [shape = 'u32[0]{0}', space=smem, size = 0, offset = 0, fixed_abs, tag = 'smem constant byte address 0x0 - null']
  %s0 = inlined_call_operand.hbm [shape: f32[8,256], index: 0, kind: input, shape index: {}]
  %s1 = inlined_call_operand.hbm [shape: f32[8,256], index: 1, kind: output, shape index: {}]
  %s2 = sld [smem:[#allocation0]]
  $region2: #{tpu_custom_call.1} parent=0
    _
  %s4 = ssub.s32 1, %s2
  %s5 = scalar_select 0, %s4, %s2
  %s6 = smul.u32 0, 8
  %s7 = sshra.s32 %s6, 3
  %s8 = sand.u32 %s6, 7
  %s9 = smul.u32 %s7, 2
  %s10 = smul.addr %s9, 128
  %s11 = scalar_lea.hbm %s0, %s10
  %s12 = smul.addr %s9, 128
  %s13 = scalar_lea.hbm %s1, %s12
  %s15 = sshll.u32 1, 14
  %s16 = sxor.u32 4294967295, %s15
  %s19 = sshll.u32 3, 24
  %s20 = sxor.u32 4294967295, %s19
  %s21 = sand.u32 0, %s20
  %s23 = sor.u32 %s21, 0
  %26 = dma.general %s11, 256, %s13, [#allocation2], [#allocation3], [#allocation4], %s23, 0
  %s27 = smul.u32 8, 1
  %s28 = smul.u32 %s27, 2
  %s29 = sshll.u32 %s28, 4
  %30 = dma.done [#allocation2], %s29
  %31 = vsyncmov [#allocation2]
  %s32 = vpop.sfrf %31
  %p33 = scmp.eq.s32.totalorder %s32, 0
  %p34 = pneg %p33
  %36 = shalt.err (%p34)

</llo_original>
